<compile_context>
chip_gen: v6e
topology: v6e:2x2x1
jax: 0.10.0
libtpu: 0.0.40
codegen_flags: <defaults>
</compile_context>

<pallas_src>
import functools

import jax
import jax.numpy as jnp
import numpy as np
from jax.experimental import pallas as pl
from jax.experimental.pallas import tpu as pltpu


def _cat_token_embed_kernel(x_ref, w_ref, b_ref, o_ref, *, roll_shift):
    # x_ref: (1, N) flattened (A*B) input, lane-dense.
    # w_ref: (TD, 3) VMEM, b_ref: (TD, 1) VMEM, o_ref: (TD, N) VMEM.
    x0 = x_ref[...]                               # (1, N)
    # Circular neighbours along A expressed as lane rotations of the flat
    # vector: roll by +B -> x[(i-1) mod A, b], roll by -B -> x[(i+1) mod A, b].
    xm1 = jnp.roll(x0, roll_shift, axis=1)
    xp1 = jnp.roll(x0, -roll_shift, axis=1)
    w = w_ref[...]                                # (TD, 3)
    # One broadcasted expression for the whole (TD, N) block: (TD,1) * (1,N).
    o_ref[...] = (
        w[:, 0:1] * xm1
        + w[:, 1:2] * x0
        + w[:, 2:3] * xp1
        + b_ref[...]
    )


def _pick_feature_tile(d_feature, n_cols, itemsize, budget_bytes=6 << 20):
    """Feature-axis block: a multiple-of-8 divisor of D (sublane rule) whose
    (TD, N) output block fits the per-buffer VMEM budget; falls back to the
    whole D when D is small or not a multiple of 8 (e.g. d_feature=10)."""
    if d_feature % 8 != 0:
        return d_feature
    max_td = max(8, budget_bytes // max(1, n_cols * itemsize))
    td = 8
    for cand in range(8, d_feature + 1, 8):
        if d_feature % cand == 0 and cand <= max_td:
            td = cand
    return td


def cat_token_embedding(x, weight, bias):
    """x: (A, B) f32, weight: (D, 1, 3) f32, bias: (D,) f32 -> (D, A, B) f32."""
    A, B = x.shape
    D = weight.shape[0]
    N = A * B

    x_flat = x.reshape(1, N)          # row-major: column i*B + b  <->  x[i, b]
    w2 = weight.reshape(D, 3)
    b2 = bias.reshape(D, 1)

    TD = _pick_feature_tile(D, N, jnp.dtype(x.dtype).itemsize)
    grid = (D // TD,)

    kernel = functools.partial(_cat_token_embed_kernel, roll_shift=B % N)

    out_flat = pl.pallas_call(
        kernel,
        out_shape=jax.ShapeDtypeStruct((D, N), x.dtype),
        grid=grid,
        in_specs=[
            pl.BlockSpec((1, N), lambda d: (0, 0)),    # full flat x, resident
            pl.BlockSpec((TD, 3), lambda d: (d, 0)),   # weight rows of block
            pl.BlockSpec((TD, 1), lambda d: (d, 0)),   # bias rows of block
        ],
        out_specs=pl.BlockSpec((TD, N), lambda d: (d, 0)),
        compiler_params=pltpu.CompilerParams(
            dimension_semantics=("parallel",),
            vmem_limit_bytes=32 * 1024 * 1024,
        ),
    )(x_flat, w2, b2)

    # Free row-major bitcast back to the PyTorch output layout.
    return out_flat.reshape(D, A, B)


def _reference(x, weight, bias):
    """Pure-JAX reference of the same circular conv."""
    D = weight.shape[0]
    w = weight.reshape(D, 3)
    xm1 = jnp.roll(x, 1, axis=0)
    xp1 = jnp.roll(x, -1, axis=0)
    return (
        w[:, 0, None, None] * xm1[None]
        + w[:, 1, None, None] * x[None]
        + w[:, 2, None, None] * xp1[None]
        + bias[:, None, None]
    )


if __name__ == "__main__":
    c_in, d_feature = 1, 10
    A, B = 16, 8          # x is 2-D in this module's forward: (A, B)

    key = jax.random.PRNGKey(0)
    kx, kw, kb = jax.random.split(key, 3)

    x = jax.random.normal(kx, (A, B), dtype=jnp.float32)

    # Deterministic Kaiming-normal-style init (fan_in = c_in * k = 3,
    # gain for leaky_relu(0.01) = sqrt(2 / (1 + 0.01^2))).
    fan_in = c_in * 3
    gain = float(np.sqrt(2.0 / (1.0 + 0.01 ** 2)))
    std = gain / float(np.sqrt(fan_in))
    weight = std * jax.random.normal(kw, (d_feature, c_in, 3), dtype=jnp.float32)
    bound = 1.0 / float(np.sqrt(fan_in))
    bias = jax.random.uniform(
        kb, (d_feature,), minval=-bound, maxval=bound, dtype=jnp.float32
    )

    out = cat_token_embedding(x, weight, bias)
    out = jax.block_until_ready(out)

    ref = _reference(x, weight, bias)
    np.testing.assert_allclose(np.asarray(out), np.asarray(ref), rtol=1e-5, atol=1e-5)
    assert out.shape == (d_feature, A, B)

    print("KERNEL_OK")
</pallas_src>

<mosaic_0001>
module attributes {stable_mosaic.version = 11 : i64} {
  func.func @_cat_token_embed_kernel(%arg0: i32, %arg1: memref<1x128xf32, #tpu.memory_space<vmem>>, %arg2: memref<10x3xf32, #tpu.memory_space<vmem>>, %arg3: memref<10x1xf32, #tpu.memory_space<vmem>>, %arg4: memref<10x128xf32, #tpu.memory_space<vmem>>) attributes {dimension_semantics = [#tpu.dimension_semantics<parallel>], iteration_bounds = array<i64: 1>, scalar_prefetch = 0 : i64, scratch_operands = 0 : i64, tpu.core_type = #tpu.core_type<tc>, window_params = [{pipeline_mode = #tpu.pipeline_mode<synchronous>, transform_indices = @transform_0, window_bounds = array<i64: 1, 128>}, {transform_indices = @transform_1, window_bounds = array<i64: 10, 3>}, {transform_indices = @transform_2, window_bounds = array<i64: 10, 1>}, {transform_indices = @transform_3, window_bounds = array<i64: 10, 128>}]} {
    %c0 = arith.constant 0 : index
    %c0_0 = arith.constant 0 : index
    %0 = vector.load %arg1[%c0, %c0_0] : memref<1x128xf32, #tpu.memory_space<vmem>>, vector<1x128xf32>
    %1 = vector.extract_strided_slice %0 {offsets = [0, 120], sizes = [1, 8], strides = [1, 1]} : vector<1x128xf32> to vector<1x8xf32>
    %2 = vector.extract_strided_slice %0 {offsets = [0, 0], sizes = [1, 120], strides = [1, 1]} : vector<1x128xf32> to vector<1x120xf32>
    %3 = tpu.concatenate %1, %2 in 1 : vector<1x8xf32>, vector<1x120xf32> -> vector<1x128xf32>
    %4 = vector.extract_strided_slice %0 {offsets = [0, 8], sizes = [1, 120], strides = [1, 1]} : vector<1x128xf32> to vector<1x120xf32>
    %5 = vector.extract_strided_slice %0 {offsets = [0, 0], sizes = [1, 8], strides = [1, 1]} : vector<1x128xf32> to vector<1x8xf32>
    %6 = tpu.concatenate %4, %5 in 1 : vector<1x120xf32>, vector<1x8xf32> -> vector<1x128xf32>
    %c0_1 = arith.constant 0 : index
    %c0_2 = arith.constant 0 : index
    %7 = vector.load %arg2[%c0_1, %c0_2] : memref<10x3xf32, #tpu.memory_space<vmem>>, vector<10x3xf32>
    %8 = vector.extract_strided_slice %7 {offsets = [0, 0], sizes = [10, 1], strides = [1, 1]} : vector<10x3xf32> to vector<10x1xf32>
    %9 = vector.broadcast %8 : vector<10x1xf32> to vector<10x128xf32>
    %10 = vector.broadcast %3 : vector<1x128xf32> to vector<10x128xf32>
    %11 = arith.mulf %9, %10 : vector<10x128xf32>
    %12 = vector.extract_strided_slice %7 {offsets = [0, 1], sizes = [10, 1], strides = [1, 1]} : vector<10x3xf32> to vector<10x1xf32>
    %13 = vector.broadcast %12 : vector<10x1xf32> to vector<10x128xf32>
    %14 = vector.broadcast %0 : vector<1x128xf32> to vector<10x128xf32>
    %15 = arith.mulf %13, %14 : vector<10x128xf32>
    %16 = arith.addf %11, %15 : vector<10x128xf32>
    %17 = vector.extract_strided_slice %7 {offsets = [0, 2], sizes = [10, 1], strides = [1, 1]} : vector<10x3xf32> to vector<10x1xf32>
    %18 = vector.broadcast %17 : vector<10x1xf32> to vector<10x128xf32>
    %19 = vector.broadcast %6 : vector<1x128xf32> to vector<10x128xf32>
    %20 = arith.mulf %18, %19 : vector<10x128xf32>
    %21 = arith.addf %16, %20 : vector<10x128xf32>
    %c0_3 = arith.constant 0 : index
    %c0_4 = arith.constant 0 : index
    %22 = vector.load %arg3[%c0_3, %c0_4] : memref<10x1xf32, #tpu.memory_space<vmem>>, vector<10x1xf32>
    %23 = vector.broadcast %22 : vector<10x1xf32> to vector<10x128xf32>
    %24 = arith.addf %21, %23 : vector<10x128xf32>
    %c0_5 = arith.constant 0 : index
    %c0_6 = arith.constant 0 : index
    %25 = vector.load %arg4[%c0_5, %c0_6] : memref<10x128xf32, #tpu.memory_space<vmem>>, vector<10x128xf32>
    tpu.vector_store %arg4[%c0_5, %c0_6], %24 {strides = array<i32>} : memref<10x128xf32, #tpu.memory_space<vmem>>, vector<10x128xf32>,
    return
  }
  func.func @transform_0(%arg0: i32) -> (i32, i32) {
    %c0_i32 = arith.constant 0 : i32
    %c0_i32_0 = arith.constant 0 : i32
    %c0_i32_1 = arith.constant 0 : i32
    return %c0_i32, %c0_i32_0 : i32, i32
  }
  func.func @transform_1(%arg0: i32) -> (i32, i32) {
    %c0_i32 = arith.constant 0 : i32
    %c0_i32_0 = arith.constant 0 : i32
    return %arg0, %c0_i32 : i32, i32
  }
  func.func @transform_2(%arg0: i32) -> (i32, i32) {
    %c0_i32 = arith.constant 0 : i32
    %c0_i32_0 = arith.constant 0 : i32
    return %arg0, %c0_i32 : i32, i32
  }
  func.func @transform_3(%arg0: i32) -> (i32, i32) {
    %c0_i32 = arith.constant 0 : i32
    %c0_i32_0 = arith.constant 0 : i32
    return %arg0, %c0_i32 : i32, i32
  }
}

</mosaic_0001>

<llo_original>
// kernel: tpu_custom_call.1
$region0: #{tpu_custom_call.1}
  #allocation0 [shape = 'u32[]', space=smem, size = 0x4, offset = 0x4, fixed_abs, tag = 'smem constant byte address 0x4 - core index']
  #allocation1 [shape = 'u32[144,128]{1,0:T(1,128)}', space=vmem, size = 0x12000, scoped, tag = 'internal scratch']
  %s0 = inlined_call_operand.vmem [shape: f32[1,128], index: 0, kind: input, shape index: {}]
  %s1 = inlined_call_operand.vmem [shape: f32[10,3], index: 1, kind: input, shape index: {}]
  %s2 = inlined_call_operand.vmem [shape: f32[10,1], index: 2, kind: input, shape index: {}]
  %s3 = inlined_call_operand.hbm [shape: f32[10,128], index: 3, kind: output, shape index: {}]
  %s4 = sld [smem:[#allocation0]]
  $region22: #{tpu_custom_call.1} parent=0
    _
  %s6 = ssub.s32 1, %s4
  %s7 = scalar_select 0, %s6, %s4
  $region1: #{tpu_custom_call.1} parent=0
    #allocation2 [shape = 'u8[8192]{0}', space=vmem, size = 0x2000, scoped, tag = 'output window, operand 0, single buffered']
    #allocation3 [shape = 's32[1]{0}', space=sflag, size = 0x4, scoped, tag = 'scoped memory for tpu_custom_call.1']
    %8 = vsyncpa [#allocation3], 0
    // Predicated region
    $region2: #{tpu_custom_call.1} parent=1 // pred_check
      _
    $region3: #{tpu_custom_call.1} parent=1 // pred_check_branch
      %10 = sbr.rel (0) target = $region5
    $region4: #{tpu_custom_call.1} parent=1 // pred_region
      _
    $region5: #{tpu_custom_call.1} parent=1 // pred_fallthru
      _
    // Predicated region
    $region6: #{tpu_custom_call.1} parent=1 // pred_check
      _
    $region7: #{tpu_custom_call.1} parent=1 // pred_check_branch
      %12 = sbr.rel (0) target = $region9
    $region8: #{tpu_custom_call.1} parent=1 // pred_region
      _
    $region9: #{tpu_custom_call.1} parent=1 // pred_fallthru
      _
    // Predicated region
    $region10: #{tpu_custom_call.1} parent=1 // pred_check
      _
    $region11: #{tpu_custom_call.1} parent=1 // pred_check_branch
      %14 = sbr.rel (0) target = $region13
    $region12: #{tpu_custom_call.1} parent=1 // pred_region
      _
    $region13: #{tpu_custom_call.1} parent=1 // pred_fallthru
      _
    %v15 = vld [vmem:[%s0] sm:$0x1]
    %v17 = vlaneseq
    %v18 = vshrl.u32 %v17, 7
    %v19 = vsub.s32 0, %v18
    %v20 = vrot.slane %v15, %v19
    %21 = vrot.lane.b32.xlu0 %v20, 8
    %v22 = vpop.permute.xlu0 %21
    %24 = vrot.lane.b32.xlu0 %v20, 120
    %v25 = vpop.permute.xlu0 %24
    %v27 = vld [vmem:[%s1] sm:$0xff]
    %v28 = vld [vmem:[%s1 + $0x8] sm:$0x3]
    %30 = vset.pattern.permute.xlu0 0
    %31 = vperm.xlu0 %30, %v27
    %v32 = vpop.permute.xlu0 %31
    %35 = vset.pattern.permute.xlu0 0
    %36 = vperm.xlu0 %35, %v28
    %v37 = vpop.permute.xlu0 %36
    %v39 = vlaneseq
    %v40 = vshrl.u32 %v39, 7
    %v41 = vsub.s32 0, %v40
    %v42 = vrot.slane %v22, %v41
    %v43 = vmul.f32 %v32, %v42
    %v44 = vmul.f32 %v37, %v42
    %45 = vset.pattern.permute.xlu0 1
    %46 = vperm.xlu0 %45, %v27
    %v47 = vpop.permute.xlu0 %46
    %49 = vset.pattern.permute.xlu0 1
    %50 = vperm.xlu0 %49, %v28
    %v51 = vpop.permute.xlu0 %50
    %v54 = vmul.f32 %v47, %v20
    %v55 = vmul.f32 %v51, %v20
    %v56 = vadd.f32 %v43, %v54
    %v57 = vadd.f32 %v44, %v55
    %58 = vset.pattern.permute.xlu0 2
    %59 = vperm.xlu0 %58, %v27
    %v60 = vpop.permute.xlu0 %59
    %62 = vset.pattern.permute.xlu0 2
    %63 = vperm.xlu0 %62, %v28
    %v64 = vpop.permute.xlu0 %63
    %v66 = vlaneseq
    %v67 = vshrl.u32 %v66, 7
    %v68 = vsub.s32 0, %v67
    %v69 = vrot.slane %v25, %v68
    %v70 = vmul.f32 %v60, %v69
    %v71 = vmul.f32 %v64, %v69
    %v72 = vadd.f32 %v56, %v70
    %v73 = vadd.f32 %v57, %v71
    %v74 = vld [vmem:[%s2] sm:$0xff]
    %v75 = vld [vmem:[%s2 + $0x8] sm:$0x3]
    %77 = vset.pattern.permute.xlu0 0
    %78 = vperm.xlu0 %77, %v74
    %v79 = vpop.permute.xlu0 %78
    %82 = vset.pattern.permute.xlu0 0
    %83 = vperm.xlu0 %82, %v75
    %v84 = vpop.permute.xlu0 %83
    %v86 = vadd.f32 %v72, %v79
    %v87 = vadd.f32 %v73, %v84
    %88 = vst [vmem:[#allocation2] sm:$0xff] %v86
    %89 = vst [vmem:[#allocation2 + $0x8] sm:$0x3] %v87
    // Predicated region
    $region14: #{tpu_custom_call.1} parent=1 // pred_check
      _
    $region15: #{tpu_custom_call.1} parent=1 // pred_check_branch
      %91 = sbr.rel (0) target = $region17
    $region16: #{tpu_custom_call.1} parent=1 // pred_region
      %s93 = ssub.s32 256, 256
      %94 = vsyncadd [#allocation3], %s93
      %s95 = sshll.u32 [#allocation2], 4
      %s96 = int_to_ptr.vmem [resolvable:$true] %s95
      %101 = dma.vmem_to_hbm [thread:$0]  %s96, 256, %s3, [#allocation3], 128, 128, 8
    $region17: #{tpu_custom_call.1} parent=1 // pred_fallthru
      _
    // Predicated region
    $region18: #{tpu_custom_call.1} parent=1 // pred_check
      _
    $region19: #{tpu_custom_call.1} parent=1 // pred_check_branch
      %103 = sbr.rel (0) target = $region21
    $region20: #{tpu_custom_call.1} parent=1 // pred_region
      %104 = dma.done [#allocation3], 256
    $region21: #{tpu_custom_call.1} parent=1 // pred_fallthru
      _
    %105 = vsyncpa [#allocation3], 1

</llo_original>
